<compile_context>
chip_gen: v5e
topology: v5e:2x2
jax: 0.10.0
libtpu: 0.0.40
codegen_flags: <defaults>
</compile_context>

<pallas_src>
import jax
import jax.numpy as jnp
from jax.experimental import pallas as pl
from jax.experimental.pallas import tpu as pltpu  # noqa: F401  (TPU backend)

NEG_SLOPE = 0.01   # F.leaky_relu default
BN_EPS = 1e-5      # nn.BatchNorm1d default
LANE = 128


def _round_up(n, m):
    return ((n + m - 1) // m) * m


def _pad_lanes(a, width):
    pad = width - a.shape[-1]
    if pad == 0:
        return a
    return jnp.pad(a, ((0, 0), (0, pad)))


def _leaky_relu(h):
    return jnp.where(h >= 0, h, NEG_SLOPE * h)


def _batch_norm_train(h, gamma, beta):
    # Single-pass batch norm: E[h] and E[h^2] reduced concurrently.
    s1 = jnp.mean(h, axis=0, keepdims=True)
    s2 = jnp.mean(h * h, axis=0, keepdims=True)
    var = jnp.maximum(s2 - s1 * s1, 0.0)
    return (h - s1) * jax.lax.rsqrt(var + BN_EPS) * gamma + beta


def _actor_math(x, w0, w1, w2, vecs, F, Np):
    """Shared math used by both the Pallas kernel and the pure-JAX reference.

    x:   (B, Kp) f32           w0: (Kp, F) bf16
    w1:  (F, F)  bf16          w2: (F, Np) bf16
    vecs: (8, V) f32 rows = [b0, g0, be0, b1, g1, be1, b2(padded), 0]
    """
    b0 = vecs[0:1, :F]
    g0 = vecs[1:2, :F]
    be0 = vecs[2:3, :F]
    b1 = vecs[3:4, :F]
    g1 = vecs[4:5, :F]
    be1 = vecs[5:6, :F]
    b2 = vecs[6:7, :Np]

    h = jnp.dot(x.astype(jnp.bfloat16), w0, preferred_element_type=jnp.float32) + b0
    h = _batch_norm_train(_leaky_relu(h), g0, be0)

    h = jnp.dot(h.astype(jnp.bfloat16), w1, preferred_element_type=jnp.float32) + b1
    h = _batch_norm_train(_leaky_relu(h), g1, be1)

    y = jnp.dot(h.astype(jnp.bfloat16), w2, preferred_element_type=jnp.float32) + b2
    return jnp.tanh(y)


def _make_kernel(F, Np):
    def actor_kernel(x_ref, w0_ref, w1_ref, w2_ref, vec_ref, out_ref):
        out_ref[...] = _actor_math(x_ref[...], w0_ref[...], w1_ref[...],
                                   w2_ref[...], vec_ref[...], F, Np)
    return actor_kernel


def _full_spec(shape):
    # Full-array block (single grid point; exempt from the (8,128) constraint).
    return pl.BlockSpec(shape, lambda: (0,) * len(shape))


def actor_forward(state, packed, *, action_size):
    """state: (B, state_size) f32, packed = (w0p, w1p, w2p, vecs)."""
    w0, w1, w2, vecs = packed
    B = state.shape[0]
    Kp, F = w0.shape
    Np = w2.shape[1]

    x = _pad_lanes(state.astype(jnp.float32), Kp)
    operands = (x, w0, w1, w2, vecs)

    out_pad = pl.pallas_call(
        _make_kernel(F, Np),
        out_shape=jax.ShapeDtypeStruct((B, Np), jnp.float32),
        in_specs=[_full_spec(op.shape) for op in operands],
        out_specs=_full_spec((B, Np)),
    )(*operands)
    return out_pad[:, :action_size]


def init_actor_params(key, state_size, action_size, fc_units=128):
    """Deterministic synthetic init mirroring the PyTorch reset_parameters()."""
    ks = jax.random.split(key, 6)
    lim_hidden = 1.0 / jnp.sqrt(jnp.float32(fc_units))     # hidden_init(fc1)
    lim_b0 = 1.0 / jnp.sqrt(jnp.float32(state_size))       # default nn.Linear bias init
    lim_b1 = 1.0 / jnp.sqrt(jnp.float32(fc_units))

    # Weights stored pre-transposed: [in, out]  (y = x @ W + b)
    w0 = jax.random.uniform(ks[0], (state_size, fc_units), jnp.float32, -lim_hidden, lim_hidden)
    b0 = jax.random.uniform(ks[1], (1, fc_units), jnp.float32, -lim_b0, lim_b0)
    w1 = jax.random.uniform(ks[2], (fc_units, fc_units), jnp.float32, -lim_hidden, lim_hidden)
    b1 = jax.random.uniform(ks[3], (1, fc_units), jnp.float32, -lim_b1, lim_b1)
    w2 = jax.random.uniform(ks[4], (fc_units, action_size), jnp.float32, -0.003, 0.003)
    b2 = jax.random.uniform(ks[5], (1, action_size), jnp.float32, -lim_b1, lim_b1)

    # BatchNorm1d affine params at PyTorch defaults.
    g0 = jnp.ones((1, fc_units), jnp.float32)
    be0 = jnp.zeros((1, fc_units), jnp.float32)
    g1 = jnp.ones((1, fc_units), jnp.float32)
    be1 = jnp.zeros((1, fc_units), jnp.float32)

    return (w0, b0, g0, be0, w1, b1, g1, be1, w2, b2)


def pack_actor_params(params, state_size, action_size, fc_units):
    """Pad weights to lane-aligned shapes (bf16) and pack all small per-feature
    vectors into a single (8, V) f32 operand."""
    (w0, b0, g0, be0, w1, b1, g1, be1, w2, b2) = params
    Kp = _round_up(state_size, LANE)
    Np = _round_up(action_size, LANE)
    V = max(fc_units, Np)

    w0p = jnp.zeros((Kp, fc_units), jnp.float32).at[:state_size, :].set(w0)
    w2p = jnp.zeros((fc_units, Np), jnp.float32).at[:, :action_size].set(w2)

    w0p = w0p.astype(jnp.bfloat16)
    w1p = w1.astype(jnp.bfloat16)
    w2p = w2p.astype(jnp.bfloat16)

    vecs = jnp.zeros((8, V), jnp.float32)
    vecs = vecs.at[0, :fc_units].set(b0[0])
    vecs = vecs.at[1, :fc_units].set(g0[0])
    vecs = vecs.at[2, :fc_units].set(be0[0])
    vecs = vecs.at[3, :fc_units].set(b1[0])
    vecs = vecs.at[4, :fc_units].set(g1[0])
    vecs = vecs.at[5, :fc_units].set(be1[0])
    vecs = vecs.at[6, :action_size].set(b2[0])

    return (w0p, w1p, w2p, vecs)


def actor_reference(state, packed, *, action_size):
    """Pure-JAX reference using the exact same (packed, bf16-weight) math."""
    w0, w1, w2, vecs = packed
    Kp, F = w0.shape
    Np = w2.shape[1]
    x = _pad_lanes(state.astype(jnp.float32), Kp)
    y = _actor_math(x, w0, w1, w2, vecs, F, Np)
    return y[:, :action_size]


if __name__ == "__main__":
    B, STATE_SIZE, ACTION_SIZE, FC_UNITS = 8, 32, 8, 128

    key = jax.random.PRNGKey(0)
    k_state, k_params = jax.random.split(key)
    state = jax.random.normal(k_state, (B, STATE_SIZE), dtype=jnp.float32)

    logical = init_actor_params(k_params, STATE_SIZE, ACTION_SIZE, FC_UNITS)
    packed = pack_actor_params(logical, STATE_SIZE, ACTION_SIZE, FC_UNITS)

    out = actor_forward(state, packed, action_size=ACTION_SIZE)
    out = jax.block_until_ready(out)

    ref = actor_reference(state, packed, action_size=ACTION_SIZE)
    assert out.shape == (B, ACTION_SIZE)
    assert jnp.allclose(out, ref, atol=2e-4, rtol=2e-4), "mismatch vs JAX reference"

    print("KERNEL_OK")
</pallas_src>

<mosaic_0001>
module attributes {stable_mosaic.version = 11 : i64} {
  func.func @actor_kernel(%arg0: memref<8x128xf32, #tpu.memory_space<vmem>>, %arg1: memref<128x128xbf16, #tpu.memory_space<vmem>>, %arg2: memref<128x128xbf16, #tpu.memory_space<vmem>>, %arg3: memref<128x128xbf16, #tpu.memory_space<vmem>>, %arg4: memref<8x128xf32, #tpu.memory_space<vmem>>, %arg5: memref<8x128xf32, #tpu.memory_space<vmem>>) attributes {dimension_semantics = [], scalar_prefetch = 0 : i64, scratch_operands = 0 : i64, tpu.core_type = #tpu.core_type<tc>} {
    %c0 = arith.constant 0 : index
    %c0_0 = arith.constant 0 : index
    %0 = vector.load %arg0[%c0, %c0_0] : memref<8x128xf32, #tpu.memory_space<vmem>>, vector<8x128xf32>
    %c0_1 = arith.constant 0 : index
    %c0_2 = arith.constant 0 : index
    %1 = vector.load %arg1[%c0_1, %c0_2] : memref<128x128xbf16, #tpu.memory_space<vmem>>, vector<128x128xbf16>
    %c0_3 = arith.constant 0 : index
    %c0_4 = arith.constant 0 : index
    %2 = vector.load %arg2[%c0_3, %c0_4] : memref<128x128xbf16, #tpu.memory_space<vmem>>, vector<128x128xbf16>
    %c0_5 = arith.constant 0 : index
    %c0_6 = arith.constant 0 : index
    %3 = vector.load %arg3[%c0_5, %c0_6] : memref<128x128xbf16, #tpu.memory_space<vmem>>, vector<128x128xbf16>
    %c0_7 = arith.constant 0 : index
    %c0_8 = arith.constant 0 : index
    %4 = vector.load %arg4[%c0_7, %c0_8] : memref<8x128xf32, #tpu.memory_space<vmem>>, vector<8x128xf32>
    %5 = vector.extract_strided_slice %4 {offsets = [0, 0], sizes = [1, 128], strides = [1, 1]} : vector<8x128xf32> to vector<1x128xf32>
    %6 = vector.extract_strided_slice %4 {offsets = [1, 0], sizes = [1, 128], strides = [1, 1]} : vector<8x128xf32> to vector<1x128xf32>
    %7 = vector.extract_strided_slice %4 {offsets = [2, 0], sizes = [1, 128], strides = [1, 1]} : vector<8x128xf32> to vector<1x128xf32>
    %8 = vector.extract_strided_slice %4 {offsets = [3, 0], sizes = [1, 128], strides = [1, 1]} : vector<8x128xf32> to vector<1x128xf32>
    %9 = vector.extract_strided_slice %4 {offsets = [4, 0], sizes = [1, 128], strides = [1, 1]} : vector<8x128xf32> to vector<1x128xf32>
    %10 = vector.extract_strided_slice %4 {offsets = [5, 0], sizes = [1, 128], strides = [1, 1]} : vector<8x128xf32> to vector<1x128xf32>
    %11 = vector.extract_strided_slice %4 {offsets = [6, 0], sizes = [1, 128], strides = [1, 1]} : vector<8x128xf32> to vector<1x128xf32>
    %12 = arith.truncf %0 : vector<8x128xf32> to vector<8x128xbf16>
    %cst = arith.constant dense<0.000000e+00> : vector<8x128xf32>
    %13 = tpu.matmul %12, %1, %cst {dimension_numbers = #tpu.dot_dimension_numbers<[1], [0], [0], [1], [0, 0, 1, 1], [], []>} : vector<8x128xbf16>, vector<128x128xbf16>, vector<8x128xf32> -> vector<8x128xf32>
    %14 = vector.broadcast %5 : vector<1x128xf32> to vector<8x128xf32>
    %15 = arith.addf %13, %14 : vector<8x128xf32>
    %cst_9 = arith.constant 0.000000e+00 : f32
    %16 = vector.broadcast %cst_9 : f32 to vector<8x128xf32>
    %17 = arith.cmpf oge, %15, %16 : vector<8x128xf32>
    %cst_10 = arith.constant 0.00999999977 : f32
    %18 = vector.broadcast %cst_10 : f32 to vector<8x128xf32>
    %19 = arith.mulf %18, %15 : vector<8x128xf32>
    %20 = arith.select %17, %15, %19 : vector<8x128xi1>, vector<8x128xf32>
    %cst_11 = arith.constant dense<0.000000e+00> : vector<128xf32>
    %21 = vector.multi_reduction <add>, %20, %cst_11 [0] : vector<8x128xf32> to vector<128xf32>
    %22 = vector.shape_cast %21 : vector<128xf32> to vector<1x128xf32>
    %cst_12 = arith.constant 8.000000e+00 : f32
    %23 = vector.broadcast %cst_12 : f32 to vector<1x128xf32>
    %24 = arith.divf %22, %23 : vector<1x128xf32>
    %25 = arith.mulf %20, %20 : vector<8x128xf32>
    %cst_13 = arith.constant dense<0.000000e+00> : vector<128xf32>
    %26 = vector.multi_reduction <add>, %25, %cst_13 [0] : vector<8x128xf32> to vector<128xf32>
    %27 = vector.shape_cast %26 : vector<128xf32> to vector<1x128xf32>
    %cst_14 = arith.constant 8.000000e+00 : f32
    %28 = vector.broadcast %cst_14 : f32 to vector<1x128xf32>
    %29 = arith.divf %27, %28 : vector<1x128xf32>
    %30 = arith.mulf %24, %24 : vector<1x128xf32>
    %31 = arith.subf %29, %30 : vector<1x128xf32>
    %cst_15 = arith.constant 0.000000e+00 : f32
    %32 = vector.broadcast %cst_15 : f32 to vector<1x128xf32>
    %33 = arith.maximumf %31, %32 : vector<1x128xf32>
    %34 = vector.broadcast %24 : vector<1x128xf32> to vector<8x128xf32>
    %35 = arith.subf %20, %34 : vector<8x128xf32>
    %cst_16 = arith.constant 9.99999974E-6 : f32
    %36 = vector.broadcast %cst_16 : f32 to vector<1x128xf32>
    %37 = arith.addf %33, %36 : vector<1x128xf32>
    %38 = math.rsqrt %37 : vector<1x128xf32>
    %39 = vector.broadcast %38 : vector<1x128xf32> to vector<8x128xf32>
    %40 = arith.mulf %35, %39 : vector<8x128xf32>
    %41 = vector.broadcast %6 : vector<1x128xf32> to vector<8x128xf32>
    %42 = arith.mulf %40, %41 : vector<8x128xf32>
    %43 = vector.broadcast %7 : vector<1x128xf32> to vector<8x128xf32>
    %44 = arith.addf %42, %43 : vector<8x128xf32>
    %45 = arith.truncf %44 : vector<8x128xf32> to vector<8x128xbf16>
    %cst_17 = arith.constant dense<0.000000e+00> : vector<8x128xf32>
    %46 = tpu.matmul %45, %2, %cst_17 {dimension_numbers = #tpu.dot_dimension_numbers<[1], [0], [0], [1], [0, 0, 1, 1], [], []>} : vector<8x128xbf16>, vector<128x128xbf16>, vector<8x128xf32> -> vector<8x128xf32>
    %47 = vector.broadcast %8 : vector<1x128xf32> to vector<8x128xf32>
    %48 = arith.addf %46, %47 : vector<8x128xf32>
    %cst_18 = arith.constant 0.000000e+00 : f32
    %49 = vector.broadcast %cst_18 : f32 to vector<8x128xf32>
    %50 = arith.cmpf oge, %48, %49 : vector<8x128xf32>
    %cst_19 = arith.constant 0.00999999977 : f32
    %51 = vector.broadcast %cst_19 : f32 to vector<8x128xf32>
    %52 = arith.mulf %51, %48 : vector<8x128xf32>
    %53 = arith.select %50, %48, %52 : vector<8x128xi1>, vector<8x128xf32>
    %cst_20 = arith.constant dense<0.000000e+00> : vector<128xf32>
    %54 = vector.multi_reduction <add>, %53, %cst_20 [0] : vector<8x128xf32> to vector<128xf32>
    %55 = vector.shape_cast %54 : vector<128xf32> to vector<1x128xf32>
    %cst_21 = arith.constant 8.000000e+00 : f32
    %56 = vector.broadcast %cst_21 : f32 to vector<1x128xf32>
    %57 = arith.divf %55, %56 : vector<1x128xf32>
    %58 = arith.mulf %53, %53 : vector<8x128xf32>
    %cst_22 = arith.constant dense<0.000000e+00> : vector<128xf32>
    %59 = vector.multi_reduction <add>, %58, %cst_22 [0] : vector<8x128xf32> to vector<128xf32>
    %60 = vector.shape_cast %59 : vector<128xf32> to vector<1x128xf32>
    %cst_23 = arith.constant 8.000000e+00 : f32
    %61 = vector.broadcast %cst_23 : f32 to vector<1x128xf32>
    %62 = arith.divf %60, %61 : vector<1x128xf32>
    %63 = arith.mulf %57, %57 : vector<1x128xf32>
    %64 = arith.subf %62, %63 : vector<1x128xf32>
    %cst_24 = arith.constant 0.000000e+00 : f32
    %65 = vector.broadcast %cst_24 : f32 to vector<1x128xf32>
    %66 = arith.maximumf %64, %65 : vector<1x128xf32>
    %67 = vector.broadcast %57 : vector<1x128xf32> to vector<8x128xf32>
    %68 = arith.subf %53, %67 : vector<8x128xf32>
    %cst_25 = arith.constant 9.99999974E-6 : f32
    %69 = vector.broadcast %cst_25 : f32 to vector<1x128xf32>
    %70 = arith.addf %66, %69 : vector<1x128xf32>
    %71 = math.rsqrt %70 : vector<1x128xf32>
    %72 = vector.broadcast %71 : vector<1x128xf32> to vector<8x128xf32>
    %73 = arith.mulf %68, %72 : vector<8x128xf32>
    %74 = vector.broadcast %9 : vector<1x128xf32> to vector<8x128xf32>
    %75 = arith.mulf %73, %74 : vector<8x128xf32>
    %76 = vector.broadcast %10 : vector<1x128xf32> to vector<8x128xf32>
    %77 = arith.addf %75, %76 : vector<8x128xf32>
    %78 = arith.truncf %77 : vector<8x128xf32> to vector<8x128xbf16>
    %cst_26 = arith.constant dense<0.000000e+00> : vector<8x128xf32>
    %79 = tpu.matmul %78, %3, %cst_26 {dimension_numbers = #tpu.dot_dimension_numbers<[1], [0], [0], [1], [0, 0, 1, 1], [], []>} : vector<8x128xbf16>, vector<128x128xbf16>, vector<8x128xf32> -> vector<8x128xf32>
    %80 = vector.broadcast %11 : vector<1x128xf32> to vector<8x128xf32>
    %81 = arith.addf %79, %80 : vector<8x128xf32>
    %82 = math.tanh %81 : vector<8x128xf32>
    %c0_27 = arith.constant 0 : index
    %c0_28 = arith.constant 0 : index
    %83 = vector.load %arg5[%c0_27, %c0_28] : memref<8x128xf32, #tpu.memory_space<vmem>>, vector<8x128xf32>
    tpu.vector_store %arg5[%c0_27, %c0_28], %82 {strides = array<i32>} : memref<8x128xf32, #tpu.memory_space<vmem>>, vector<8x128xf32>,
    return
  }
}

</mosaic_0001>

<llo_original>
// kernel: tpu_custom_call.1
$region0: #{tpu_custom_call.1}
  #allocation0 [shape = 'u32[]', space=smem, size = 0x4, offset = 0x4, fixed_abs, tag = 'smem constant byte address 0x4 - core index']
  #allocation1 [shape = 'u32[72,128]{1,0:T(1,128)}', space=vmem, size = 0x9000, scoped, tag = 'internal scratch']
  %s0 = inlined_call_operand.hbm [shape: f32[8,128], index: 0, kind: input, shape index: {}]
  %s1 = inlined_call_operand.hbm [shape: bf16[128,128], index: 1, kind: input, shape index: {}]
  %s2 = inlined_call_operand.hbm [shape: bf16[128,128], index: 2, kind: input, shape index: {}]
  %s3 = inlined_call_operand.hbm [shape: bf16[128,128], index: 3, kind: input, shape index: {}]
  %s4 = inlined_call_operand.hbm [shape: f32[8,128], index: 4, kind: input, shape index: {}]
  %s5 = inlined_call_operand.hbm [shape: f32[8,128], index: 5, kind: output, shape index: {}]
  %s6 = sld [smem:[#allocation0]]
  $region50: #{tpu_custom_call.1} parent=0
    _
  %s8 = ssub.s32 1, %s6
  %s9 = scalar_select 0, %s8, %s6
  $region1: #{tpu_custom_call.1} parent=0
    #allocation2 [shape = 'u8[4096]{0}', space=vmem, size = 0x1000, scoped, tag = 'input window, operand 0, single buffered']
    #allocation3 [shape = 's32[1]{0}', space=sflag, size = 0x4, scoped, tag = 'scoped memory for tpu_custom_call.1']
    #allocation4 [shape = 's32[1]{0}', space=sflag, size = 0x4, scoped, tag = 'scoped memory for tpu_custom_call.1']
    #allocation5 [shape = 'u8[32768]{0}', space=vmem, size = 0x8000, scoped, tag = 'input window, operand 1, single buffered']
    #allocation6 [shape = 's32[1]{0}', space=sflag, size = 0x4, scoped, tag = 'scoped memory for tpu_custom_call.1']
    #allocation7 [shape = 'u8[32768]{0}', space=vmem, size = 0x8000, scoped, tag = 'input window, operand 2, single buffered']
    #allocation8 [shape = 'u8[32768]{0}', space=vmem, size = 0x8000, scoped, tag = 'input window, operand 3, single buffered']
    #allocation9 [shape = 's32[1]{0}', space=sflag, size = 0x4, scoped, tag = 'scoped memory for tpu_custom_call.1']
    #allocation10 [shape = 'u8[4096]{0}', space=vmem, size = 0x1000, scoped, tag = 'input window, operand 4, single buffered']
    #allocation11 [shape = 'u8[4096]{0}', space=vmem, size = 0x1000, scoped, tag = 'output window, operand 0, single buffered']
    %10 = vsyncpa [#allocation3], 0
    %11 = vsyncpa [#allocation6], 0
    %12 = vsyncpa [#allocation9], 0
    %13 = vsyncpa [#allocation4], 0
    // Predicated region
    $region2: #{tpu_custom_call.1} parent=1 // pred_check
      _
    $region3: #{tpu_custom_call.1} parent=1 // pred_check_branch
      %15 = sbr.rel (0) target = $region5
    $region4: #{tpu_custom_call.1} parent=1 // pred_region
      %17 = vsyncadd [#allocation3], 0
      %s19 = sshll.u32 %s0, 4
      %s20 = int_to_ptr.hbm [resolvable:$true] %s19
      %s21 = sshll.u32 [#allocation2], 4
      %s22 = int_to_ptr.vmem [resolvable:$true] %s21
      %24 = dma.hbm_to_vmem [thread:$0]  %s20, 128, %s22, [#allocation3]
    $region5: #{tpu_custom_call.1} parent=1 // pred_fallthru
      _
    // Predicated region
    $region6: #{tpu_custom_call.1} parent=1 // pred_check
      _
    $region7: #{tpu_custom_call.1} parent=1 // pred_check_branch
      %26 = sbr.rel (0) target = $region9
    $region8: #{tpu_custom_call.1} parent=1 // pred_region
      %28 = vsyncadd [#allocation6], 0
      %s29 = sshll.u32 %s1, 4
      %s30 = int_to_ptr.hbm [resolvable:$true] %s29
      %s31 = sshll.u32 [#allocation5], 4
      %s32 = int_to_ptr.vmem [resolvable:$true] %s31
      %37 = dma.hbm_to_vmem [thread:$0]  %s30, 1024, %s32, [#allocation6], 64, 64, 4
    $region9: #{tpu_custom_call.1} parent=1 // pred_fallthru
      _
    // Predicated region
    $region10: #{tpu_custom_call.1} parent=1 // pred_check
      _
    $region11: #{tpu_custom_call.1} parent=1 // pred_check_branch
      %39 = sbr.rel (0) target = $region13
    $region12: #{tpu_custom_call.1} parent=1 // pred_region
      %41 = vsyncadd [#allocation6], 0
      %s42 = sshll.u32 %s2, 4
      %s43 = int_to_ptr.hbm [resolvable:$true] %s42
      %s44 = sshll.u32 [#allocation7], 4
      %s45 = int_to_ptr.vmem [resolvable:$true] %s44
      %50 = dma.hbm_to_vmem [thread:$0]  %s43, 1024, %s45, [#allocation6], 64, 64, 4
    $region13: #{tpu_custom_call.1} parent=1 // pred_fallthru
      _
    // Predicated region
    $region14: #{tpu_custom_call.1} parent=1 // pred_check
      _
    $region15: #{tpu_custom_call.1} parent=1 // pred_check_branch
      %52 = sbr.rel (0) target = $region17
    $region16: #{tpu_custom_call.1} parent=1 // pred_region
      %54 = vsyncadd [#allocation9], 0
      %s55 = sshll.u32 %s3, 4
      %s56 = int_to_ptr.hbm [resolvable:$true] %s55
      %s57 = sshll.u32 [#allocation8], 4
      %s58 = int_to_ptr.vmem [resolvable:$true] %s57
      %63 = dma.hbm_to_vmem [thread:$0]  %s56, 1024, %s58, [#allocation9], 64, 64, 4
    $region17: #{tpu_custom_call.1} parent=1 // pred_fallthru
      _
    // Predicated region
    $region18: #{tpu_custom_call.1} parent=1 // pred_check
      _
    $region19: #{tpu_custom_call.1} parent=1 // pred_check_branch
      %65 = sbr.rel (0) target = $region21
    $region20: #{tpu_custom_call.1} parent=1 // pred_region
      %67 = vsyncadd [#allocation9], 0
      %s69 = sshll.u32 %s4, 4
      %s70 = int_to_ptr.hbm [resolvable:$true] %s69
      %s71 = sshll.u32 [#allocation10], 4
      %s72 = int_to_ptr.vmem [resolvable:$true] %s71
      %74 = dma.hbm_to_vmem [thread:$0]  %s70, 128, %s72, [#allocation9]
    $region21: #{tpu_custom_call.1} parent=1 // pred_fallthru
      _
    // Predicated region
    $region22: #{tpu_custom_call.1} parent=1 // pred_check
      _
    $region23: #{tpu_custom_call.1} parent=1 // pred_check_branch
      %76 = sbr.rel (0) target = $region25
    $region24: #{tpu_custom_call.1} parent=1 // pred_region
      %78 = dma.done [#allocation3], 128
    $region25: #{tpu_custom_call.1} parent=1 // pred_fallthru
      _
    // Predicated region
    $region26: #{tpu_custom_call.1} parent=1 // pred_check
      _
    $region27: #{tpu_custom_call.1} parent=1 // pred_check_branch
      %80 = sbr.rel (0) target = $region29
    $region28: #{tpu_custom_call.1} parent=1 // pred_region
      %82 = dma.done [#allocation6], 1024
    $region29: #{tpu_custom_call.1} parent=1 // pred_fallthru
      _
    // Predicated region
    $region30: #{tpu_custom_call.1} parent=1 // pred_check
      _
    $region31: #{tpu_custom_call.1} parent=1 // pred_check_branch
      %84 = sbr.rel (0) target = $region33
    $region32: #{tpu_custom_call.1} parent=1 // pred_region
      %86 = dma.done [#allocation6], 1024
    $region33: #{tpu_custom_call.1} parent=1 // pred_fallthru
      _
    // Predicated region
    $region34: #{tpu_custom_call.1} parent=1 // pred_check
      _
    $region35: #{tpu_custom_call.1} parent=1 // pred_check_branch
      %88 = sbr.rel (0) target = $region37
    $region36: #{tpu_custom_call.1} parent=1 // pred_region
      %90 = dma.done [#allocation9], 1024
    $region37: #{tpu_custom_call.1} parent=1 // pred_fallthru
      _
    // Predicated region
    $region38: #{tpu_custom_call.1} parent=1 // pred_check
      _
    $region39: #{tpu_custom_call.1} parent=1 // pred_check_branch
      %92 = sbr.rel (0) target = $region41
    $region40: #{tpu_custom_call.1} parent=1 // pred_region
      %94 = dma.done [#allocation9], 128
    $region41: #{tpu_custom_call.1} parent=1 // pred_fallthru
      _
    %v95 = vld [vmem:[#allocation2] sm:$0xff]
    %v96 = vld [vmem:[#allocation5] sm:$0xf]
    %v97 = vld [vmem:[#allocation5 + $0x4] sm:$0xf]
    %v98 = vld [vmem:[#allocation5 + $0x8] sm:$0xf]
    %v99 = vld [vmem:[#allocation5 + $0xc] sm:$0xf]
    %v100 = vld [vmem:[#allocation5 + $0x10] sm:$0xf]
    %v101 = vld [vmem:[#allocation5 + $0x14] sm:$0xf]
    %v102 = vld [vmem:[#allocation5 + $0x18] sm:$0xf]
    %v103 = vld [vmem:[#allocation5 + $0x1c] sm:$0xf]
    %v104 = vld [vmem:[#allocation5 + $0x20] sm:$0xf]
    %v105 = vld [vmem:[#allocation5 + $0x24] sm:$0xf]
    %v106 = vld [vmem:[#allocation5 + $0x28] sm:$0xf]
    %v107 = vld [vmem:[#allocation5 + $0x2c] sm:$0xf]
    %v108 = vld [vmem:[#allocation5 + $0x30] sm:$0xf]
    %v109 = vld [vmem:[#allocation5 + $0x34] sm:$0xf]
    %v110 = vld [vmem:[#allocation5 + $0x38] sm:$0xf]
    %v111 = vld [vmem:[#allocation5 + $0x3c] sm:$0xf]
    %v112 = vld [vmem:[#allocation7] sm:$0xf]
    %v113 = vld [vmem:[#allocation7 + $0x4] sm:$0xf]
    %v114 = vld [vmem:[#allocation7 + $0x8] sm:$0xf]
    %v115 = vld [vmem:[#allocation7 + $0xc] sm:$0xf]
    %v116 = vld [vmem:[#allocation7 + $0x10] sm:$0xf]
    %v117 = vld [vmem:[#allocation7 + $0x14] sm:$0xf]
    %v118 = vld [vmem:[#allocation7 + $0x18] sm:$0xf]
    %v119 = vld [vmem:[#allocation7 + $0x1c] sm:$0xf]
    %v120 = vld [vmem:[#allocation7 + $0x20] sm:$0xf]
    %v121 = vld [vmem:[#allocation7 + $0x24] sm:$0xf]
    %v122 = vld [vmem:[#allocation7 + $0x28] sm:$0xf]
    %v123 = vld [vmem:[#allocation7 + $0x2c] sm:$0xf]
    %v124 = vld [vmem:[#allocation7 + $0x30] sm:$0xf]
    %v125 = vld [vmem:[#allocation7 + $0x34] sm:$0xf]
    %v126 = vld [vmem:[#allocation7 + $0x38] sm:$0xf]
    %v127 = vld [vmem:[#allocation7 + $0x3c] sm:$0xf]
    %v128 = vld [vmem:[#allocation8] sm:$0xf]
    %v129 = vld [vmem:[#allocation8 + $0x4] sm:$0xf]
    %v130 = vld [vmem:[#allocation8 + $0x8] sm:$0xf]
    %v131 = vld [vmem:[#allocation8 + $0xc] sm:$0xf]
    %v132 = vld [vmem:[#allocation8 + $0x10] sm:$0xf]
    %v133 = vld [vmem:[#allocation8 + $0x14] sm:$0xf]
    %v134 = vld [vmem:[#allocation8 + $0x18] sm:$0xf]
    %v135 = vld [vmem:[#allocation8 + $0x1c] sm:$0xf]
    %v136 = vld [vmem:[#allocation8 + $0x20] sm:$0xf]
    %v137 = vld [vmem:[#allocation8 + $0x24] sm:$0xf]
    %v138 = vld [vmem:[#allocation8 + $0x28] sm:$0xf]
    %v139 = vld [vmem:[#allocation8 + $0x2c] sm:$0xf]
    %v140 = vld [vmem:[#allocation8 + $0x30] sm:$0xf]
    %v141 = vld [vmem:[#allocation8 + $0x34] sm:$0xf]
    %v142 = vld [vmem:[#allocation8 + $0x38] sm:$0xf]
    %v143 = vld [vmem:[#allocation8 + $0x3c] sm:$0xf]
    %v144 = vld [vmem:[#allocation10] sm:$0xff]
    %v145 = vpack.c.bf16 %v95, %v95
    %v146 = vperm.slane %v144, 0
    %v163 = vunpack.c.l.b16 %v96
    %v164 = vunpack.c.l.b16 %v97
    %v165 = vunpack.c.l.b16 %v98
    %v166 = vunpack.c.l.b16 %v99
    %v167 = vunpack.c.l.b16 %v100
    %v168 = vunpack.c.l.b16 %v101
    %v169 = vunpack.c.l.b16 %v102
    %v170 = vunpack.c.l.b16 %v103
    %v171 = vunpack.c.l.b16 %v104
    %v172 = vunpack.c.l.b16 %v105
    %v173 = vunpack.c.l.b16 %v106
    %v174 = vunpack.c.l.b16 %v107
    %v175 = vunpack.c.l.b16 %v108
    %v176 = vunpack.c.l.b16 %v109
    %v177 = vunpack.c.l.b16 %v110
    %v178 = vunpack.c.l.b16 %v111
    %v179 = vpack.c.b16 %v164, %v163
    %v180 = vpack.c.b16 %v166, %v165
    %v181 = vpack.c.b16 %v168, %v167
    %v182 = vpack.c.b16 %v170, %v169
    %v183 = vpack.c.b16 %v172, %v171
    %v184 = vpack.c.b16 %v174, %v173
    %v185 = vpack.c.b16 %v176, %v175
    %v186 = vpack.c.b16 %v178, %v177
    %195 = vmatpush.bf16.msra.mxu0 %v186
    %196 = vmatpush.bf16.msra.mxu0 %v185
    %197 = vmatpush.bf16.msra.mxu0 %v184
    %198 = vmatpush.bf16.msra.mxu0 %v183
    %199 = vmatpush.bf16.msra.mxu0 %v182
    %200 = vmatpush.bf16.msra.mxu0 %v181
    %201 = vmatpush.bf16.msra.mxu0 %v180
    %202 = vmatpush.bf16.msra.mxu0 %v179
    %203 = vmatmul.bf16.gmra.mxu0 %v145
    %v204 = vpop.f32.mrf.mxu0
    %v205 = vadd.f32 %v146, %v204
    %v206 = vpop.f32.mrf.mxu0
    %207 = vdwg.mxu0
    %vm208 = vcmp.ge.f32.partialorder %v205, 0.0
    %v209 = vmul.f32 %v205, 0.01
    %v210 = vsel %vm208, %v205, %v209
    %v211 = vrot.slane %v210, 4
    %v212 = vadd.f32 %v210, %v211
    %v213 = vrot.slane %v212, 2
    %v214 = vadd.f32 %v212, %v213
    %v215 = vrot.slane %v214, 1
    %v216 = vadd.f32 %v214, %v215
    %v217 = vrcp.pop 8.0
    %v218 = vmul.f32 8.0, %v217
    %v219 = vsub.f32 1.0, %v218
    %v220 = vmul.f32 %v217, %v219
    %v221 = vadd.f32 %v217, %v220
    %vm222 = vweird.f32 %v217
    %v223 = vsel %vm222, %v217, %v221
    %v224 = vmul.f32 %v216, %v223
    %v225 = vmul.f32 %v210, %v210
    %v226 = vrot.slane %v225, 4
    %v227 = vadd.f32 %v225, %v226
    %v228 = vrot.slane %v227, 2
    %v229 = vadd.f32 %v227, %v228
    %v230 = vrot.slane %v229, 1
    %v231 = vadd.f32 %v229, %v230
    %v232 = vmul.f32 %v231, %v223
    %v233 = vmul.f32 %v224, %v224
    %v234 = vsub.f32 %v232, %v233
    %v235 = vmax.f32 %v234, 0.0
    %v236 = vsub.f32 %v210, %v224
    %v237 = vadd.f32 %v235, 1e-05
    %v238 = vrsqrt.pop %v237
    %v239 = vmul.f32 %v238, %v237
    %v240 = vmul.f32 %v239, %v238
    %v241 = vmul.f32 0.5, %v240
    %v242 = vsub.f32 1.5, %v241
    %v243 = vmul.f32 %v238, %v242
    %vm244 = vweird.f32 %v237
    %vm245 = vweird.f32 %v238
    %vm246 = vmor %vm244, %vm245
    %v247 = vsel %vm246, %v238, %v243
    %v248 = vmul.f32 %v236, %v247
    %v249 = vperm.slane %v144, 1
    %v250 = vmul.f32 %v248, %v249
    %v251 = vperm.slane %v144, 2
    %v252 = vadd.f32 %v250, %v251
    %v253 = vpack.c.bf16 %v252, %v252
    %v254 = vperm.slane %v144, 3
    %v271 = vunpack.c.l.b16 %v112
    %v272 = vunpack.c.l.b16 %v113
    %v273 = vunpack.c.l.b16 %v114
    %v274 = vunpack.c.l.b16 %v115
    %v275 = vunpack.c.l.b16 %v116
    %v276 = vunpack.c.l.b16 %v117
    %v277 = vunpack.c.l.b16 %v118
    %v278 = vunpack.c.l.b16 %v119
    %v279 = vunpack.c.l.b16 %v120
    %v280 = vunpack.c.l.b16 %v121
    %v281 = vunpack.c.l.b16 %v122
    %v282 = vunpack.c.l.b16 %v123
    %v283 = vunpack.c.l.b16 %v124
    %v284 = vunpack.c.l.b16 %v125
    %v285 = vunpack.c.l.b16 %v126
    %v286 = vunpack.c.l.b16 %v127
    %v287 = vpack.c.b16 %v272, %v271
    %v288 = vpack.c.b16 %v274, %v273
    %v289 = vpack.c.b16 %v276, %v275
    %v290 = vpack.c.b16 %v278, %v277
    %v291 = vpack.c.b16 %v280, %v279
    %v292 = vpack.c.b16 %v282, %v281
    %v293 = vpack.c.b16 %v284, %v283
    %v294 = vpack.c.b16 %v286, %v285
    %303 = vmatpush.bf16.msra.mxu0 %v294
    %304 = vmatpush.bf16.msra.mxu0 %v293
    %305 = vmatpush.bf16.msra.mxu0 %v292
    %306 = vmatpush.bf16.msra.mxu0 %v291
    %307 = vmatpush.bf16.msra.mxu0 %v290
    %308 = vmatpush.bf16.msra.mxu0 %v289
    %309 = vmatpush.bf16.msra.mxu0 %v288
    %310 = vmatpush.bf16.msra.mxu0 %v287
    %311 = vmatmul.bf16.gmra.mxu0 %v253
    %v312 = vpop.f32.mrf.mxu0
    %v313 = vadd.f32 %v254, %v312
    %v314 = vpop.f32.mrf.mxu0
    %315 = vdwg.mxu0
    %vm316 = vcmp.ge.f32.partialorder %v313, 0.0
    %v317 = vmul.f32 %v313, 0.01
    %v318 = vsel %vm316, %v313, %v317
    %v319 = vrot.slane %v318, 4
    %v320 = vadd.f32 %v318, %v319
    %v321 = vrot.slane %v320, 2
    %v322 = vadd.f32 %v320, %v321
    %v323 = vrot.slane %v322, 1
    %v324 = vadd.f32 %v322, %v323
    %v325 = vmul.f32 %v324, %v223
    %v326 = vmul.f32 %v318, %v318
    %v327 = vrot.slane %v326, 4
    %v328 = vadd.f32 %v326, %v327
    %v329 = vrot.slane %v328, 2
    %v330 = vadd.f32 %v328, %v329
    %v331 = vrot.slane %v330, 1
    %v332 = vadd.f32 %v330, %v331
    %v333 = vmul.f32 %v332, %v223
    %v334 = vmul.f32 %v325, %v325
    %v335 = vsub.f32 %v333, %v334
    %v336 = vmax.f32 %v335, 0.0
    %v337 = vsub.f32 %v318, %v325
    %v338 = vadd.f32 %v336, 1e-05
    %v339 = vrsqrt.pop %v338
    %v340 = vmul.f32 %v339, %v338
    %v341 = vmul.f32 %v340, %v339
    %v342 = vmul.f32 0.5, %v341
    %v343 = vsub.f32 1.5, %v342
    %v344 = vmul.f32 %v339, %v343
    %vm345 = vweird.f32 %v338
    %vm346 = vweird.f32 %v339
    %vm347 = vmor %vm345, %vm346
    %v348 = vsel %vm347, %v339, %v344
    %v349 = vmul.f32 %v337, %v348
    %v350 = vperm.slane %v144, 4
    %v351 = vmul.f32 %v349, %v350
    %v352 = vperm.slane %v144, 5
    %v353 = vadd.f32 %v351, %v352
    %v354 = vpack.c.bf16 %v353, %v353
    %v355 = vperm.slane %v144, 6
    %v372 = vunpack.c.l.b16 %v128
    %v373 = vunpack.c.l.b16 %v129
    %v374 = vunpack.c.l.b16 %v130
    %v375 = vunpack.c.l.b16 %v131
    %v376 = vunpack.c.l.b16 %v132
    %v377 = vunpack.c.l.b16 %v133
    %v378 = vunpack.c.l.b16 %v134
    %v379 = vunpack.c.l.b16 %v135
    %v380 = vunpack.c.l.b16 %v136
    %v381 = vunpack.c.l.b16 %v137
    %v382 = vunpack.c.l.b16 %v138
    %v383 = vunpack.c.l.b16 %v139
    %v384 = vunpack.c.l.b16 %v140
    %v385 = vunpack.c.l.b16 %v141
    %v386 = vunpack.c.l.b16 %v142
    %v387 = vunpack.c.l.b16 %v143
    %v388 = vpack.c.b16 %v373, %v372
    %v389 = vpack.c.b16 %v375, %v374
    %v390 = vpack.c.b16 %v377, %v376
    %v391 = vpack.c.b16 %v379, %v378
    %v392 = vpack.c.b16 %v381, %v380
    %v393 = vpack.c.b16 %v383, %v382
    %v394 = vpack.c.b16 %v385, %v384
    %v395 = vpack.c.b16 %v387, %v386
    %404 = vmatpush.bf16.msra.mxu0 %v395
    %405 = vmatpush.bf16.msra.mxu0 %v394
    %406 = vmatpush.bf16.msra.mxu0 %v393
    %407 = vmatpush.bf16.msra.mxu0 %v392
    %408 = vmatpush.bf16.msra.mxu0 %v391
    %409 = vmatpush.bf16.msra.mxu0 %v390
    %410 = vmatpush.bf16.msra.mxu0 %v389
    %411 = vmatpush.bf16.msra.mxu0 %v388
    %412 = vmatmul.bf16.gmra.mxu0 %v354
    %v413 = vpop.f32.mrf.mxu0
    %v414 = vadd.f32 %v355, %v413
    %v415 = vpop.f32.mrf.mxu0
    %416 = vdwg.mxu0
    %v417 = vtanh.pop %v414
    %418 = vst [vmem:[#allocation11] sm:$0xff] %v417
    // Predicated region
    $region42: #{tpu_custom_call.1} parent=1 // pred_check
      _
    $region43: #{tpu_custom_call.1} parent=1 // pred_check_branch
      %420 = sbr.rel (0) target = $region45
    $region44: #{tpu_custom_call.1} parent=1 // pred_region
      %422 = vsyncadd [#allocation4], 0
      %s424 = sshll.u32 [#allocation11], 4
      %s425 = int_to_ptr.vmem [resolvable:$true] %s424
      %s426 = sshll.u32 %s5, 4
      %s427 = int_to_ptr.hbm [resolvable:$true] %s426
      %429 = dma.vmem_to_hbm [thread:$0]  %s425, 128, %s427, [#allocation4]
    $region45: #{tpu_custom_call.1} parent=1 // pred_fallthru
      _
    // Predicated region
    $region46: #{tpu_custom_call.1} parent=1 // pred_check
      _
    $region47: #{tpu_custom_call.1} parent=1 // pred_check_branch
      %431 = sbr.rel (0) target = $region49
    $region48: #{tpu_custom_call.1} parent=1 // pred_region
      %433 = dma.done [#allocation4], 128
    $region49: #{tpu_custom_call.1} parent=1 // pred_fallthru
      _
    %434 = vsyncpa [#allocation3], 1
    %435 = vsyncpa [#allocation6], 1
    %436 = vsyncpa [#allocation9], 1
    %437 = vsyncpa [#allocation4], 1

</llo_original>
